<compile_context>
chip_gen: v6e
topology: v6e:2x2x1
jax: 0.10.0
libtpu: 0.0.40
codegen_flags: <defaults>
</compile_context>

<pallas_src>
import jax
import jax.numpy as jnp
import numpy as np
from jax import lax
from jax.experimental import pallas as pl
from jax.experimental.pallas import tpu as pltpu


def _lstm_heads_kernel(xp_ref, whh_ref, wout_ref, bout_ref, out_ref, h_scr, c_scr):
    """One (batch-tile, time-chunk) grid step of the LSTM recurrence + fused heads.

    xp_ref  : (TC, Bt, 4H) f32  pre-projected gate inputs (X @ W_ih^T + b), streamed
    whh_ref : (H, 4H)      bf16 hidden->gates weight (pre-transposed, gate order i,f,g,o)
    wout_ref: (H, Cpad)    bf16 concatenated + padded task-head weights
    bout_ref: (1, Cpad)    f32  concatenated + padded task-head biases
    out_ref : (Bt, Cpad)   f32  concatenated task logits (written at last chunk)
    h_scr, c_scr : (Bt, H) f32  recurrent state, persistent across time-chunks
    """
    t_idx = pl.program_id(1)
    n_t = pl.num_programs(1)
    TC = xp_ref.shape[0]
    H = whh_ref.shape[0]

    @pl.when(t_idx == 0)
    def _():
        h_scr[...] = jnp.zeros_like(h_scr)
        c_scr[...] = jnp.zeros_like(c_scr)

    w_hh = whh_ref[...]  # (H, 4H) loaded once per chunk, not once per step

    def step(t, carry):
        h, c = carry  # f32 (Bt, H) kept in vregs, not VMEM
        gates = xp_ref[t] + jnp.dot(h.astype(w_hh.dtype), w_hh,
                                    preferred_element_type=jnp.float32)
        i = jax.nn.sigmoid(gates[:, 0 * H:1 * H])
        f = jax.nn.sigmoid(gates[:, 1 * H:2 * H])
        g = jnp.tanh(gates[:, 2 * H:3 * H])
        o = jax.nn.sigmoid(gates[:, 3 * H:4 * H])
        c_new = f * c + i * g
        h_new = o * jnp.tanh(c_new)
        return h_new, c_new

    h_fin, c_fin = lax.fori_loop(0, TC, step, (h_scr[...], c_scr[...]), unroll=True)
    h_scr[...] = h_fin
    c_scr[...] = c_fin

    @pl.when(t_idx == n_t - 1)
    def _():
        # Dropout(0.3) is identity at inference; then ReLU, then fused heads.
        feat = jnp.maximum(c_fin, 0.0).astype(wout_ref.dtype)
        out_ref[...] = (jnp.dot(feat, wout_ref[...],
                                preferred_element_type=jnp.float32) + bout_ref[...])


def _pick_time_chunk(T, max_chunk):
    tc = max(1, min(T, max_chunk))
    while T % tc != 0:
        tc -= 1
    return tc


def _pick_batch_tile(B):
    if B % 8 != 0:
        return B           # full-batch block (allowed when equal to full dim)
    bt = 8
    while bt * 2 <= min(B, 128) and B % (bt * 2) == 0:
        bt *= 2
    return bt


def multi_task_lstm_forward(x, params, *, time_chunk=32, compute_dtype=jnp.bfloat16):
    """x: (B, T) int32 token ids. Returns list of per-task logits."""
    embed_tbl = params["embed"]                 # (V, E)
    w_ih = params["w_ih"]                       # (4H, E)
    w_hh = params["w_hh"]                       # (4H, H)
    bias = params["b_ih"] + params["b_hh"]      # (4H,)
    w_out = params["w_out"]                     # (H, C_total)
    b_out = params["b_out"]                     # (C_total,)
    task_classes = params["task_classes"]

    B, T = x.shape
    H = w_hh.shape[1]
    G = 4 * H
    C_total = w_out.shape[1]
    cdt = compute_dtype

    # Embedding gather directly time-major (avoids an HBM transpose of (B,T,E)).
    emb_tm = jnp.take(embed_tbl.astype(cdt), x.T, axis=0)             # (T, B, E)

    # Hoisted, time-parallel input projection as one big matmul; bias folded in.
    # Gate pre-activations kept in f32 for LSTM numerics.
    x_proj = jnp.einsum("tbe,eg->tbg", emb_tm, w_ih.T.astype(cdt),
                        preferred_element_type=jnp.float32)
    x_proj = x_proj + bias.astype(jnp.float32)[None, None, :]          # (T, B, 4H)

    # Fused, lane-dense task heads: pad concatenated columns to a 128 multiple.
    C_pad = ((C_total + 127) // 128) * 128
    w_out_p = jnp.zeros((H, C_pad), cdt).at[:, :C_total].set(w_out.astype(cdt))
    b_out_p = jnp.zeros((1, C_pad), jnp.float32).at[:, :C_total].set(
        b_out.astype(jnp.float32))

    w_hh_t = w_hh.T.astype(cdt)                                        # (H, 4H)

    tc = _pick_time_chunk(T, time_chunk)
    n_t = T // tc
    b_tile = _pick_batch_tile(B)
    n_b = B // b_tile

    out = pl.pallas_call(
        _lstm_heads_kernel,
        out_shape=jax.ShapeDtypeStruct((B, C_pad), jnp.float32),
        grid=(n_b, n_t),
        in_specs=[
            # streamed projected-gates chunks: (tc, b_tile, 4H)
            pl.BlockSpec((tc, b_tile, G), lambda bi, ti: (ti, bi, 0)),
            # weights / biases resident in VMEM across the whole grid
            pl.BlockSpec((H, G), lambda bi, ti: (0, 0)),
            pl.BlockSpec((H, C_pad), lambda bi, ti: (0, 0)),
            pl.BlockSpec((1, C_pad), lambda bi, ti: (0, 0)),
        ],
        out_specs=pl.BlockSpec((b_tile, C_pad), lambda bi, ti: (bi, 0)),
        scratch_shapes=[pltpu.VMEM((b_tile, H), jnp.float32),   # h state
                        pltpu.VMEM((b_tile, H), jnp.float32)],  # c state
        compiler_params=pltpu.CompilerParams(
            dimension_semantics=("parallel", "arbitrary")),
    )(x_proj, w_hh_t, w_out_p, b_out_p)

    logits = out[:, :C_total]
    outs, off = [], 0
    for c in task_classes:
        outs.append(logits[:, off:off + c])
        off += c
    return outs


def _reference_forward(x, params, compute_dtype=jnp.bfloat16):
    """Pure-JAX reference with the same mixed-precision scheme as the kernel."""
    cdt = compute_dtype
    embed_tbl = params["embed"].astype(cdt)
    w_ih_t = params["w_ih"].T.astype(cdt)
    w_hh_t = params["w_hh"].T.astype(cdt)
    bias = (params["b_ih"] + params["b_hh"]).astype(jnp.float32)
    w_out = params["w_out"].astype(cdt)
    b_out = params["b_out"].astype(jnp.float32)
    task_classes = params["task_classes"]
    B = x.shape[0]
    H = params["w_hh"].shape[1]

    emb = jnp.take(embed_tbl, x.T, axis=0)  # (T, B, E)

    def step(carry, x_t):
        h, c = carry
        gates = (jnp.dot(x_t, w_ih_t, preferred_element_type=jnp.float32)
                 + jnp.dot(h.astype(cdt), w_hh_t, preferred_element_type=jnp.float32)
                 + bias[None, :])
        i = jax.nn.sigmoid(gates[:, 0 * H:1 * H])
        f = jax.nn.sigmoid(gates[:, 1 * H:2 * H])
        g = jnp.tanh(gates[:, 2 * H:3 * H])
        o = jax.nn.sigmoid(gates[:, 3 * H:4 * H])
        c = f * c + i * g
        h = o * jnp.tanh(c)
        return (h, c), None

    init = (jnp.zeros((B, H), jnp.float32), jnp.zeros((B, H), jnp.float32))
    (_, c_fin), _ = lax.scan(step, init, emb)
    feat = jnp.maximum(c_fin, 0.0).astype(cdt)
    logits = jnp.dot(feat, w_out, preferred_element_type=jnp.float32) + b_out[None, :]
    outs, off = [], 0
    for c in task_classes:
        outs.append(logits[:, off:off + c])
        off += c
    return outs


def init_params(key, vocab_size, emb_dim, hid_dim, task_classes):
    """Deterministic synthetic parameters matching nn.Module shapes (D=1)."""
    ks = jax.random.split(key, 6 + 2 * len(task_classes))
    s = 1.0 / float(hid_dim) ** 0.5
    embed = jax.random.normal(ks[0], (vocab_size, emb_dim), jnp.float32)
    w_ih = jax.random.uniform(ks[1], (4 * hid_dim, emb_dim), jnp.float32, -s, s)
    w_hh = jax.random.uniform(ks[2], (4 * hid_dim, hid_dim), jnp.float32, -s, s)
    b_ih = jax.random.uniform(ks[3], (4 * hid_dim,), jnp.float32, -s, s)
    b_hh = jax.random.uniform(ks[4], (4 * hid_dim,), jnp.float32, -s, s)

    w_heads, b_heads = [], []
    for i, c in enumerate(task_classes):
        sh = 1.0 / float(hid_dim) ** 0.5
        w_heads.append(jax.random.uniform(ks[5 + 2 * i], (hid_dim, c),
                                          jnp.float32, -sh, sh))
        b_heads.append(jax.random.uniform(ks[6 + 2 * i], (c,),
                                          jnp.float32, -sh, sh))
    w_out = jnp.concatenate(w_heads, axis=1)            # (H, sum(C_i))
    b_out = jnp.concatenate(b_heads, axis=0)            # (sum(C_i),)

    return dict(embed=embed, w_ih=w_ih, w_hh=w_hh, b_ih=b_ih, b_hh=b_hh,
                w_out=w_out, b_out=b_out, task_classes=tuple(task_classes))


if __name__ == "__main__":
    # Small deterministic config: batch=2, seq=8, vocab=32, emb_dim=16, hid_dim=32.
    B, T = 2, 8
    vocab_size, emb_dim, hid_dim = 32, 16, 32
    task_classes = [3, 4, 5]

    key = jax.random.PRNGKey(0)
    k_x, k_p = jax.random.split(key)
    x = jax.random.randint(k_x, (B, T), 0, vocab_size, dtype=jnp.int32)
    params = init_params(k_p, vocab_size, emb_dim, hid_dim, task_classes)

    # TODO(synk): Dropout(0.3) has no inference-time effect; training-mode dropout
    # (random masking + 1/(1-p) scaling) is not implemented.
    # time_chunk=4 -> 2 time-chunks so the streamed-grid path is exercised.
    task_outputs = multi_task_lstm_forward(x, params, time_chunk=4)
    for o in task_outputs:
        jax.block_until_ready(o)

    assert [o.shape for o in task_outputs] == [(B, c) for c in task_classes]

    ref_outputs = _reference_forward(x, params)
    for got, ref in zip(task_outputs, ref_outputs):
        np.testing.assert_allclose(np.asarray(got), np.asarray(ref),
                                   atol=1e-2, rtol=1e-2)

    print("KERNEL_OK")
</pallas_src>

<mosaic_0001>
module attributes {stable_mosaic.version = 11 : i64} {
  func.func @_lstm_heads_kernel(%arg0: i32, %arg1: i32, %arg2: memref<4x2x128xf32, #tpu.memory_space<vmem>>, %arg3: memref<32x128xbf16, #tpu.memory_space<vmem>>, %arg4: memref<32x128xbf16, #tpu.memory_space<vmem>>, %arg5: memref<1x128xf32, #tpu.memory_space<vmem>>, %arg6: memref<2x128xf32, #tpu.memory_space<vmem>>, %arg7: memref<2x32xf32, #tpu.memory_space<vmem>>, %arg8: memref<2x32xf32, #tpu.memory_space<vmem>>) attributes {dimension_semantics = [#tpu.dimension_semantics<parallel>, #tpu.dimension_semantics<arbitrary>], iteration_bounds = array<i64: 1, 2>, scalar_prefetch = 0 : i64, scratch_operands = 2 : i64, tpu.core_type = #tpu.core_type<tc>, window_params = [{transform_indices = @transform_0, window_bounds = array<i64: 4, 2, 128>}, {pipeline_mode = #tpu.pipeline_mode<synchronous>, transform_indices = @transform_1, window_bounds = array<i64: 32, 128>}, {pipeline_mode = #tpu.pipeline_mode<synchronous>, transform_indices = @transform_2, window_bounds = array<i64: 32, 128>}, {pipeline_mode = #tpu.pipeline_mode<synchronous>, transform_indices = @transform_3, window_bounds = array<i64: 1, 128>}, {transform_indices = @transform_4, window_bounds = array<i64: 2, 128>}]} {
    %c0_i32 = arith.constant 0 : i32
    %0 = arith.cmpi eq, %arg1, %c0_i32 : i32
    %1 = arith.extui %0 : i1 to i32
    %c0_i32_0 = arith.constant 0 : i32
    %2 = arith.cmpi ne, %1, %c0_i32_0 : i32
    scf.if %2 {
      %cst_36 = arith.constant 0.000000e+00 : f32
      %135 = vector.broadcast %cst_36 : f32 to vector<2x32xf32>
      %c0_37 = arith.constant 0 : index
      %c0_38 = arith.constant 0 : index
      %136 = vector.load %arg7[%c0_37, %c0_38] : memref<2x32xf32, #tpu.memory_space<vmem>>, vector<2x32xf32>
      tpu.vector_store %arg7[%c0_37, %c0_38], %135 {strides = array<i32>} : memref<2x32xf32, #tpu.memory_space<vmem>>, vector<2x32xf32>,
      %cst_39 = arith.constant 0.000000e+00 : f32
      %137 = vector.broadcast %cst_39 : f32 to vector<2x32xf32>
      %c0_40 = arith.constant 0 : index
      %c0_41 = arith.constant 0 : index
      %138 = vector.load %arg8[%c0_40, %c0_41] : memref<2x32xf32, #tpu.memory_space<vmem>>, vector<2x32xf32>
      tpu.vector_store %arg8[%c0_40, %c0_41], %137 {strides = array<i32>} : memref<2x32xf32, #tpu.memory_space<vmem>>, vector<2x32xf32>,
    } else {
    }
    %c0 = arith.constant 0 : index
    %c0_1 = arith.constant 0 : index
    %3 = vector.load %arg3[%c0, %c0_1] : memref<32x128xbf16, #tpu.memory_space<vmem>>, vector<32x128xbf16>
    %c0_2 = arith.constant 0 : index
    %c0_3 = arith.constant 0 : index
    %4 = vector.load %arg7[%c0_2, %c0_3] : memref<2x32xf32, #tpu.memory_space<vmem>>, vector<2x32xf32>
    %c0_4 = arith.constant 0 : index
    %c0_5 = arith.constant 0 : index
    %5 = vector.load %arg8[%c0_4, %c0_5] : memref<2x32xf32, #tpu.memory_space<vmem>>, vector<2x32xf32>
    %c0_i32_6 = arith.constant 0 : i32
    %6 = arith.index_cast %c0_i32_6 : i32 to index
    %c0_7 = arith.constant 0 : index
    %c0_8 = arith.constant 0 : index
    %7 = vector.load %arg2[%6, %c0_7, %c0_8] : memref<4x2x128xf32, #tpu.memory_space<vmem>>, vector<1x2x128xf32>
    %8 = vector.shape_cast %7 : vector<1x2x128xf32> to vector<2x128xf32>
    %9 = arith.truncf %4 : vector<2x32xf32> to vector<2x32xbf16>
    %cst = arith.constant dense<0.000000e+00> : vector<2x128xf32>
    %10 = tpu.matmul %9, %3, %cst {dimension_numbers = #tpu.dot_dimension_numbers<[1], [0], [0], [1], [0, 0, 1, 1], [], []>} : vector<2x32xbf16>, vector<32x128xbf16>, vector<2x128xf32> -> vector<2x128xf32>
    %11 = arith.addf %8, %10 : vector<2x128xf32>
    %12 = vector.extract_strided_slice %11 {offsets = [0, 0], sizes = [2, 32], strides = [1, 1]} : vector<2x128xf32> to vector<2x32xf32>
    %13 = arith.negf %12 : vector<2x32xf32>
    %14 = math.exp %13 : vector<2x32xf32>
    %cst_9 = arith.constant 1.000000e+00 : f32
    %15 = vector.broadcast %cst_9 : f32 to vector<2x32xf32>
    %16 = arith.addf %15, %14 : vector<2x32xf32>
    %17 = arith.divf %15, %16 : vector<2x32xf32>
    %18 = vector.extract_strided_slice %11 {offsets = [0, 32], sizes = [2, 32], strides = [1, 1]} : vector<2x128xf32> to vector<2x32xf32>
    %19 = arith.negf %18 : vector<2x32xf32>
    %20 = math.exp %19 : vector<2x32xf32>
    %cst_10 = arith.constant 1.000000e+00 : f32
    %21 = vector.broadcast %cst_10 : f32 to vector<2x32xf32>
    %22 = arith.addf %21, %20 : vector<2x32xf32>
    %23 = arith.divf %21, %22 : vector<2x32xf32>
    %24 = vector.extract_strided_slice %11 {offsets = [0, 64], sizes = [2, 32], strides = [1, 1]} : vector<2x128xf32> to vector<2x32xf32>
    %25 = math.tanh %24 : vector<2x32xf32>
    %26 = vector.extract_strided_slice %11 {offsets = [0, 96], sizes = [2, 32], strides = [1, 1]} : vector<2x128xf32> to vector<2x32xf32>
    %27 = arith.negf %26 : vector<2x32xf32>
    %28 = math.exp %27 : vector<2x32xf32>
    %cst_11 = arith.constant 1.000000e+00 : f32
    %29 = vector.broadcast %cst_11 : f32 to vector<2x32xf32>
    %30 = arith.addf %29, %28 : vector<2x32xf32>
    %31 = arith.divf %29, %30 : vector<2x32xf32>
    %32 = arith.mulf %23, %5 : vector<2x32xf32>
    %33 = arith.mulf %17, %25 : vector<2x32xf32>
    %34 = arith.addf %32, %33 : vector<2x32xf32>
    %35 = math.tanh %34 : vector<2x32xf32>
    %36 = arith.mulf %31, %35 : vector<2x32xf32>
    %c1_i32 = arith.constant 1 : i32
    %37 = arith.index_cast %c1_i32 : i32 to index
    %c0_12 = arith.constant 0 : index
    %c0_13 = arith.constant 0 : index
    %38 = vector.load %arg2[%37, %c0_12, %c0_13] : memref<4x2x128xf32, #tpu.memory_space<vmem>>, vector<1x2x128xf32>
    %39 = vector.shape_cast %38 : vector<1x2x128xf32> to vector<2x128xf32>
    %40 = arith.truncf %36 : vector<2x32xf32> to vector<2x32xbf16>
    %cst_14 = arith.constant dense<0.000000e+00> : vector<2x128xf32>
    %41 = tpu.matmul %40, %3, %cst_14 {dimension_numbers = #tpu.dot_dimension_numbers<[1], [0], [0], [1], [0, 0, 1, 1], [], []>} : vector<2x32xbf16>, vector<32x128xbf16>, vector<2x128xf32> -> vector<2x128xf32>
    %42 = arith.addf %39, %41 : vector<2x128xf32>
    %43 = vector.extract_strided_slice %42 {offsets = [0, 0], sizes = [2, 32], strides = [1, 1]} : vector<2x128xf32> to vector<2x32xf32>
    %44 = arith.negf %43 : vector<2x32xf32>
    %45 = math.exp %44 : vector<2x32xf32>
    %cst_15 = arith.constant 1.000000e+00 : f32
    %46 = vector.broadcast %cst_15 : f32 to vector<2x32xf32>
    %47 = arith.addf %46, %45 : vector<2x32xf32>
    %48 = arith.divf %46, %47 : vector<2x32xf32>
    %49 = vector.extract_strided_slice %42 {offsets = [0, 32], sizes = [2, 32], strides = [1, 1]} : vector<2x128xf32> to vector<2x32xf32>
    %50 = arith.negf %49 : vector<2x32xf32>
    %51 = math.exp %50 : vector<2x32xf32>
    %cst_16 = arith.constant 1.000000e+00 : f32
    %52 = vector.broadcast %cst_16 : f32 to vector<2x32xf32>
    %53 = arith.addf %52, %51 : vector<2x32xf32>
    %54 = arith.divf %52, %53 : vector<2x32xf32>
    %55 = vector.extract_strided_slice %42 {offsets = [0, 64], sizes = [2, 32], strides = [1, 1]} : vector<2x128xf32> to vector<2x32xf32>
    %56 = math.tanh %55 : vector<2x32xf32>
    %57 = vector.extract_strided_slice %42 {offsets = [0, 96], sizes = [2, 32], strides = [1, 1]} : vector<2x128xf32> to vector<2x32xf32>
    %58 = arith.negf %57 : vector<2x32xf32>
    %59 = math.exp %58 : vector<2x32xf32>
    %cst_17 = arith.constant 1.000000e+00 : f32
    %60 = vector.broadcast %cst_17 : f32 to vector<2x32xf32>
    %61 = arith.addf %60, %59 : vector<2x32xf32>
    %62 = arith.divf %60, %61 : vector<2x32xf32>
    %63 = arith.mulf %54, %34 : vector<2x32xf32>
    %64 = arith.mulf %48, %56 : vector<2x32xf32>
    %65 = arith.addf %63, %64 : vector<2x32xf32>
    %66 = math.tanh %65 : vector<2x32xf32>
    %67 = arith.mulf %62, %66 : vector<2x32xf32>
    %c2_i32 = arith.constant 2 : i32
    %68 = arith.index_cast %c2_i32 : i32 to index
    %c0_18 = arith.constant 0 : index
    %c0_19 = arith.constant 0 : index
    %69 = vector.load %arg2[%68, %c0_18, %c0_19] : memref<4x2x128xf32, #tpu.memory_space<vmem>>, vector<1x2x128xf32>
    %70 = vector.shape_cast %69 : vector<1x2x128xf32> to vector<2x128xf32>
    %71 = arith.truncf %67 : vector<2x32xf32> to vector<2x32xbf16>
    %cst_20 = arith.constant dense<0.000000e+00> : vector<2x128xf32>
    %72 = tpu.matmul %71, %3, %cst_20 {dimension_numbers = #tpu.dot_dimension_numbers<[1], [0], [0], [1], [0, 0, 1, 1], [], []>} : vector<2x32xbf16>, vector<32x128xbf16>, vector<2x128xf32> -> vector<2x128xf32>
    %73 = arith.addf %70, %72 : vector<2x128xf32>
    %74 = vector.extract_strided_slice %73 {offsets = [0, 0], sizes = [2, 32], strides = [1, 1]} : vector<2x128xf32> to vector<2x32xf32>
    %75 = arith.negf %74 : vector<2x32xf32>
    %76 = math.exp %75 : vector<2x32xf32>
    %cst_21 = arith.constant 1.000000e+00 : f32
    %77 = vector.broadcast %cst_21 : f32 to vector<2x32xf32>
    %78 = arith.addf %77, %76 : vector<2x32xf32>
    %79 = arith.divf %77, %78 : vector<2x32xf32>
    %80 = vector.extract_strided_slice %73 {offsets = [0, 32], sizes = [2, 32], strides = [1, 1]} : vector<2x128xf32> to vector<2x32xf32>
    %81 = arith.negf %80 : vector<2x32xf32>
    %82 = math.exp %81 : vector<2x32xf32>
    %cst_22 = arith.constant 1.000000e+00 : f32
    %83 = vector.broadcast %cst_22 : f32 to vector<2x32xf32>
    %84 = arith.addf %83, %82 : vector<2x32xf32>
    %85 = arith.divf %83, %84 : vector<2x32xf32>
    %86 = vector.extract_strided_slice %73 {offsets = [0, 64], sizes = [2, 32], strides = [1, 1]} : vector<2x128xf32> to vector<2x32xf32>
    %87 = math.tanh %86 : vector<2x32xf32>
    %88 = vector.extract_strided_slice %73 {offsets = [0, 96], sizes = [2, 32], strides = [1, 1]} : vector<2x128xf32> to vector<2x32xf32>
    %89 = arith.negf %88 : vector<2x32xf32>
    %90 = math.exp %89 : vector<2x32xf32>
    %cst_23 = arith.constant 1.000000e+00 : f32
    %91 = vector.broadcast %cst_23 : f32 to vector<2x32xf32>
    %92 = arith.addf %91, %90 : vector<2x32xf32>
    %93 = arith.divf %91, %92 : vector<2x32xf32>
    %94 = arith.mulf %85, %65 : vector<2x32xf32>
    %95 = arith.mulf %79, %87 : vector<2x32xf32>
    %96 = arith.addf %94, %95 : vector<2x32xf32>
    %97 = math.tanh %96 : vector<2x32xf32>
    %98 = arith.mulf %93, %97 : vector<2x32xf32>
    %c3_i32 = arith.constant 3 : i32
    %99 = arith.index_cast %c3_i32 : i32 to index
    %c0_24 = arith.constant 0 : index
    %c0_25 = arith.constant 0 : index
    %100 = vector.load %arg2[%99, %c0_24, %c0_25] : memref<4x2x128xf32, #tpu.memory_space<vmem>>, vector<1x2x128xf32>
    %101 = vector.shape_cast %100 : vector<1x2x128xf32> to vector<2x128xf32>
    %102 = arith.truncf %98 : vector<2x32xf32> to vector<2x32xbf16>
    %cst_26 = arith.constant dense<0.000000e+00> : vector<2x128xf32>
    %103 = tpu.matmul %102, %3, %cst_26 {dimension_numbers = #tpu.dot_dimension_numbers<[1], [0], [0], [1], [0, 0, 1, 1], [], []>} : vector<2x32xbf16>, vector<32x128xbf16>, vector<2x128xf32> -> vector<2x128xf32>
    %104 = arith.addf %101, %103 : vector<2x128xf32>
    %105 = vector.extract_strided_slice %104 {offsets = [0, 0], sizes = [2, 32], strides = [1, 1]} : vector<2x128xf32> to vector<2x32xf32>
    %106 = arith.negf %105 : vector<2x32xf32>
    %107 = math.exp %106 : vector<2x32xf32>
    %cst_27 = arith.constant 1.000000e+00 : f32
    %108 = vector.broadcast %cst_27 : f32 to vector<2x32xf32>
    %109 = arith.addf %108, %107 : vector<2x32xf32>
    %110 = arith.divf %108, %109 : vector<2x32xf32>
    %111 = vector.extract_strided_slice %104 {offsets = [0, 32], sizes = [2, 32], strides = [1, 1]} : vector<2x128xf32> to vector<2x32xf32>
    %112 = arith.negf %111 : vector<2x32xf32>
    %113 = math.exp %112 : vector<2x32xf32>
    %cst_28 = arith.constant 1.000000e+00 : f32
    %114 = vector.broadcast %cst_28 : f32 to vector<2x32xf32>
    %115 = arith.addf %114, %113 : vector<2x32xf32>
    %116 = arith.divf %114, %115 : vector<2x32xf32>
    %117 = vector.extract_strided_slice %104 {offsets = [0, 64], sizes = [2, 32], strides = [1, 1]} : vector<2x128xf32> to vector<2x32xf32>
    %118 = math.tanh %117 : vector<2x32xf32>
    %119 = vector.extract_strided_slice %104 {offsets = [0, 96], sizes = [2, 32], strides = [1, 1]} : vector<2x128xf32> to vector<2x32xf32>
    %120 = arith.negf %119 : vector<2x32xf32>
    %121 = math.exp %120 : vector<2x32xf32>
    %cst_29 = arith.constant 1.000000e+00 : f32
    %122 = vector.broadcast %cst_29 : f32 to vector<2x32xf32>
    %123 = arith.addf %122, %121 : vector<2x32xf32>
    %124 = arith.divf %122, %123 : vector<2x32xf32>
    %125 = arith.mulf %116, %96 : vector<2x32xf32>
    %126 = arith.mulf %110, %118 : vector<2x32xf32>
    %127 = arith.addf %125, %126 : vector<2x32xf32>
    %128 = math.tanh %127 : vector<2x32xf32>
    %129 = arith.mulf %124, %128 : vector<2x32xf32>
    %c4_i32 = arith.constant 4 : i32
    %c0_30 = arith.constant 0 : index
    %c0_31 = arith.constant 0 : index
    %130 = vector.load %arg7[%c0_30, %c0_31] : memref<2x32xf32, #tpu.memory_space<vmem>>, vector<2x32xf32>
    tpu.vector_store %arg7[%c0_30, %c0_31], %129 {strides = array<i32>} : memref<2x32xf32, #tpu.memory_space<vmem>>, vector<2x32xf32>,
    %c0_32 = arith.constant 0 : index
    %c0_33 = arith.constant 0 : index
    %131 = vector.load %arg8[%c0_32, %c0_33] : memref<2x32xf32, #tpu.memory_space<vmem>>, vector<2x32xf32>
    tpu.vector_store %arg8[%c0_32, %c0_33], %127 {strides = array<i32>} : memref<2x32xf32, #tpu.memory_space<vmem>>, vector<2x32xf32>,
    %c1_i32_34 = arith.constant 1 : i32
    %132 = arith.cmpi eq, %arg1, %c1_i32_34 : i32
    %133 = arith.extui %132 : i1 to i32
    %c0_i32_35 = arith.constant 0 : i32
    %134 = arith.cmpi ne, %133, %c0_i32_35 : i32
    scf.if %134 {
      %cst_36 = arith.constant 0.000000e+00 : f32
      %135 = vector.broadcast %cst_36 : f32 to vector<2x32xf32>
      %136 = arith.maximumf %127, %135 : vector<2x32xf32>
      %137 = arith.truncf %136 : vector<2x32xf32> to vector<2x32xbf16>
      %c0_37 = arith.constant 0 : index
      %c0_38 = arith.constant 0 : index
      %138 = vector.load %arg4[%c0_37, %c0_38] : memref<32x128xbf16, #tpu.memory_space<vmem>>, vector<32x128xbf16>
      %cst_39 = arith.constant dense<0.000000e+00> : vector<2x128xf32>
      %139 = tpu.matmul %137, %138, %cst_39 {dimension_numbers = #tpu.dot_dimension_numbers<[1], [0], [0], [1], [0, 0, 1, 1], [], []>} : vector<2x32xbf16>, vector<32x128xbf16>, vector<2x128xf32> -> vector<2x128xf32>
      %c0_40 = arith.constant 0 : index
      %c0_41 = arith.constant 0 : index
      %140 = vector.load %arg5[%c0_40, %c0_41] : memref<1x128xf32, #tpu.memory_space<vmem>>, vector<1x128xf32>
      %141 = vector.broadcast %140 : vector<1x128xf32> to vector<2x128xf32>
      %142 = arith.addf %139, %141 : vector<2x128xf32>
      %c0_42 = arith.constant 0 : index
      %c0_43 = arith.constant 0 : index
      %143 = vector.load %arg6[%c0_42, %c0_43] : memref<2x128xf32, #tpu.memory_space<vmem>>, vector<2x128xf32>
      tpu.vector_store %arg6[%c0_42, %c0_43], %142 {strides = array<i32>} : memref<2x128xf32, #tpu.memory_space<vmem>>, vector<2x128xf32>,
    } else {
    }
    return
  }
  func.func @transform_0(%arg0: i32, %arg1: i32) -> (i32, i32, i32) {
    %c0_i32 = arith.constant 0 : i32
    %c0_i32_0 = arith.constant 0 : i32
    return %arg1, %arg0, %c0_i32 : i32, i32, i32
  }
  func.func @transform_1(%arg0: i32, %arg1: i32) -> (i32, i32) {
    %c0_i32 = arith.constant 0 : i32
    %c0_i32_0 = arith.constant 0 : i32
    %c0_i32_1 = arith.constant 0 : i32
    return %c0_i32, %c0_i32_0 : i32, i32
  }
  func.func @transform_2(%arg0: i32, %arg1: i32) -> (i32, i32) {
    %c0_i32 = arith.constant 0 : i32
    %c0_i32_0 = arith.constant 0 : i32
    %c0_i32_1 = arith.constant 0 : i32
    return %c0_i32, %c0_i32_0 : i32, i32
  }
  func.func @transform_3(%arg0: i32, %arg1: i32) -> (i32, i32) {
    %c0_i32 = arith.constant 0 : i32
    %c0_i32_0 = arith.constant 0 : i32
    %c0_i32_1 = arith.constant 0 : i32
    return %c0_i32, %c0_i32_0 : i32, i32
  }
  func.func @transform_4(%arg0: i32, %arg1: i32) -> (i32, i32) {
    %c0_i32 = arith.constant 0 : i32
    %c0_i32_0 = arith.constant 0 : i32
    return %arg0, %c0_i32 : i32, i32
  }
}

</mosaic_0001>

<llo_original>
// kernel: tpu_custom_call.1
$region0: #{tpu_custom_call.1}
  #allocation0 [shape = 'u32[]', space=smem, size = 0x4, offset = 0x4, fixed_abs, tag = 'smem constant byte address 0x4 - core index']
  #allocation1 [shape = 'u32[144,128]{1,0:T(1,128)}', space=vmem, size = 0x12000, scoped, tag = 'internal scratch']
  #allocation2 [shape = 'f32[2,32]{1,0:T(2,128)}', space=vmem, size = 0x400, scoped, tag = 'scratch operand']
  #allocation3 [shape = 'f32[2,32]{1,0:T(2,128)}', space=vmem, size = 0x400, scoped, tag = 'scratch operand']
  %s0 = inlined_call_operand.hbm [shape: f32[8,2,128], index: 0, kind: input, shape index: {}]
  %s1 = inlined_call_operand.hbm [shape: bf16[32,128], index: 1, kind: input, shape index: {}]
  %s2 = inlined_call_operand.hbm [shape: bf16[32,128], index: 2, kind: input, shape index: {}]
  %s3 = inlined_call_operand.vmem [shape: f32[1,128], index: 3, kind: input, shape index: {}]
  %s4 = inlined_call_operand.hbm [shape: f32[2,128], index: 4, kind: output, shape index: {}]
  %s5 = sld [smem:[#allocation0]]
  $region69: #{tpu_custom_call.1} parent=0
    _
  %s7 = ssub.s32 1, %s5
  %s8 = scalar_select 0, %s7, %s5
  $region1: #{tpu_custom_call.1} parent=0
    #allocation4 [shape = 'u8[8192]{0}', space=vmem, size = 0x2000, scoped, tag = 'input window, operand 0']
    #allocation5 [shape = 's32[2]{0}', space=sflag, size = 0x8, scoped, tag = 'scoped memory for tpu_custom_call.1']
    #allocation6 [shape = 's32[2]{0}', space=sflag, size = 0x8, scoped, tag = 'scoped memory for tpu_custom_call.1']
    #allocation7 [shape = 'u8[8192]{0}', space=vmem, size = 0x2000, scoped, tag = 'input window, operand 1, single buffered']
    #allocation8 [shape = 's32[1]{0}', space=sflag, size = 0x4, scoped, tag = 'scoped memory for tpu_custom_call.1']
    #allocation9 [shape = 'u8[8192]{0}', space=vmem, size = 0x2000, scoped, tag = 'input window, operand 2, single buffered']
    #allocation10 [shape = 'u8[1024]{0}', space=vmem, size = 0x400, scoped, tag = 'output window, operand 0, single buffered']
    %9 = vsyncpa [#allocation5], 0
    %s10 = scalar_lea.sflag [#allocation5], 1
    %11 = vsyncpa %s10, 0
    %12 = vsyncpa [#allocation8], 0
    %13 = vsyncpa [#allocation6], 0
    loop: start=0, step=1, limit=4
    $region2: #{tpu_custom_call.1} parent=1 // loop_pre_header
      _
    $region3: #{tpu_custom_call.1} parent=1 // loop_header
      %s15 = sphi 0, %s19
      %p16 = scmp.ge.s32.totalorder %s15, 4
      %s22 = sphi 0, %s34
      %s23 = sphi 0, %s30
      %s24 = sphi 0, %s22
      %s25 = sphi 0, %s23
      %s26 = sphi 0, %s24
      %s27 = sphi 0, %s25
      %s39 = sphi 0, %s41
      %s42 = sphi 0, %s39
      %s43 = sphi 0, %s42
      %s59 = sphi 0, %s43
      %s63 = sphi 0, %s63
      %s65 = sphi 0, %s63
      %s66 = sphi 0, %s65
      %s80 = sphi 0, %s66
      %s84 = sphi 0, %s84
      %s86 = sphi 0, %s84
      %s87 = sphi 0, %s86
      %s101 = sphi 0, %s87
      %s105 = sphi 0, %s105
      %s107 = sphi 0, %s105
      %s108 = sphi 0, %s107
      %s122 = sphi 0, %s108
      %s128 = sphi 0, %s130
      %s131 = sphi 0, %s128
      %s132 = sphi 0, %s131
      %s148 = sphi 0, %s132
    $region4: #{tpu_custom_call.1} parent=1 // loop_header_branch
      %18 = sbr.rel (%p16) target = $region8
    $region5: #{tpu_custom_call.1} parent=1 // loop_body
      %s20 = ssub.s32 %s15, 1
      %s21 = ssub.s32 %s15, 2
      %s28 = sadd.s32 1, %s23
      %p29 = scmp.ge.s32.totalorder %s28, 2
      %s30 = scalar_select %p29, 0, %s28
      %s31 = sadd.s32 1, %s22
      %s32 = scalar_select %p29, %s31, %s22
      %p33 = scmp.ge.s32.totalorder %s32, 1
      %s34 = scalar_select %p33, 0, %s32
      %s35 = ssub.s32 %s23, %s30
      %s36 = ssub.s32 %s22, %s34
      %s37 = sor.u32 %s35, %s36
      %p38 = scmp.eq.s32.totalorder %s37, 0
      %s40 = sadd.s32 %s39, 1
      %s41 = scalar_select %p38, %s39, %s40
      %p44 = pneg %p38
      %p45 = scmp.eq.s32.totalorder %s15, 1
      %p46 = por %p44, %p45
      %p47 = scmp.ne.s32.totalorder %s39, %s42
      %p48 = scmp.eq.s32.totalorder %s15, 0
      %p49 = por %p47, %p48
      %p50 = scmp.ne.s32.totalorder %s39, %s42
      %p51 = scmp.eq.s32.totalorder %s20, 1
      %p52 = por %p50, %p51
      %p53 = scmp.ne.s32.totalorder %s42, %s43
      %p54 = scmp.eq.s32.totalorder %s20, 0
      %p55 = por %p53, %p54
      %p56 = scmp.ne.s32.totalorder %s42, %s43
      %p57 = scmp.eq.s32.totalorder %s21, 1
      %p58 = por %p56, %p57
      %p60 = scmp.ne.s32.totalorder %s43, %s59
      %p61 = scmp.eq.s32.totalorder %s21, 0
      %p62 = por %p60, %p61
      %s64 = sadd.s32 %s63, 1
      %p67 = scmp.eq.s32.totalorder %s15, 1
      %p68 = scmp.ne.s32.totalorder %s63, %s65
      %p69 = scmp.eq.s32.totalorder %s15, 0
      %p70 = por %p68, %p69
      %p71 = scmp.ne.s32.totalorder %s63, %s65
      %p72 = scmp.eq.s32.totalorder %s20, 1
      %p73 = por %p71, %p72
      %p74 = scmp.ne.s32.totalorder %s65, %s66
      %p75 = scmp.eq.s32.totalorder %s20, 0
      %p76 = por %p74, %p75
      %p77 = scmp.ne.s32.totalorder %s65, %s66
      %p78 = scmp.eq.s32.totalorder %s21, 1
      %p79 = por %p77, %p78
      %p81 = scmp.ne.s32.totalorder %s66, %s80
      %p82 = scmp.eq.s32.totalorder %s21, 0
      %p83 = por %p81, %p82
      %s85 = sadd.s32 %s84, 1
      %p88 = scmp.eq.s32.totalorder %s15, 1
      %p89 = scmp.ne.s32.totalorder %s84, %s86
      %p90 = scmp.eq.s32.totalorder %s15, 0
      %p91 = por %p89, %p90
      %p92 = scmp.ne.s32.totalorder %s84, %s86
      %p93 = scmp.eq.s32.totalorder %s20, 1
      %p94 = por %p92, %p93
      %p95 = scmp.ne.s32.totalorder %s86, %s87
      %p96 = scmp.eq.s32.totalorder %s20, 0
      %p97 = por %p95, %p96
      %p98 = scmp.ne.s32.totalorder %s86, %s87
      %p99 = scmp.eq.s32.totalorder %s21, 1
      %p100 = por %p98, %p99
      %p102 = scmp.ne.s32.totalorder %s87, %s101
      %p103 = scmp.eq.s32.totalorder %s21, 0
      %p104 = por %p102, %p103
      %s106 = sadd.s32 %s105, 1
      %p109 = scmp.eq.s32.totalorder %s15, 1
      %p110 = scmp.ne.s32.totalorder %s105, %s107
      %p111 = scmp.eq.s32.totalorder %s15, 0
      %p112 = por %p110, %p111
      %p113 = scmp.ne.s32.totalorder %s105, %s107
      %p114 = scmp.eq.s32.totalorder %s20, 1
      %p115 = por %p113, %p114
      %p116 = scmp.ne.s32.totalorder %s107, %s108
      %p117 = scmp.eq.s32.totalorder %s20, 0
      %p118 = por %p116, %p117
      %p119 = scmp.ne.s32.totalorder %s107, %s108
      %p120 = scmp.eq.s32.totalorder %s21, 1
      %p121 = por %p119, %p120
      %p123 = scmp.ne.s32.totalorder %s108, %s122
      %p124 = scmp.eq.s32.totalorder %s21, 0
      %p125 = por %p123, %p124
      %s126 = ssub.s32 %s22, %s34
      %p127 = scmp.eq.s32.totalorder %s126, 0
      %s129 = sadd.s32 %s128, 1
      %s130 = scalar_select %p127, %s128, %s129
      %p133 = pneg %p127
      %p134 = scmp.eq.s32.totalorder %s15, 1
      %p135 = por %p133, %p134
      %p136 = scmp.ne.s32.totalorder %s128, %s131
      %p137 = scmp.eq.s32.totalorder %s15, 0
      %p138 = por %p136, %p137
      %p139 = scmp.ne.s32.totalorder %s128, %s131
      %p140 = scmp.eq.s32.totalorder %s20, 1
      %p141 = por %p139, %p140
      %p142 = scmp.ne.s32.totalorder %s131, %s132
      %p143 = scmp.eq.s32.totalorder %s20, 0
      %p144 = por %p142, %p143
      %p145 = scmp.ne.s32.totalorder %s131, %s132
      %p146 = scmp.eq.s32.totalorder %s21, 1
      %p147 = por %p145, %p146
      %p149 = scmp.ne.s32.totalorder %s132, %s148
      %p150 = scmp.eq.s32.totalorder %s21, 0
      %p151 = por %p149, %p150
      %p152 = scmp.le.s32.totalorder 1, %s15
      %p153 = scmp.lt.s32.totalorder %s15, 3
      %p154 = pnand %p152, %p153
      %p155 = pneg %p154
      // Predicated region
      $region9: #{tpu_custom_call.1} parent=5 // pred_check
        _
      $region10: #{tpu_custom_call.1} parent=5 // pred_check_branch
        %157 = sbr.rel (%p154) target = $region12
      $region11: #{tpu_custom_call.1} parent=5 // pred_region
        %s158 = ssub.s32 %s15, 1
        // Predicated region
        $region13: #{tpu_custom_call.1} parent=11 // pred_check
          %p159 = pneg %p76
        $region14: #{tpu_custom_call.1} parent=11 // pred_check_branch
          %161 = sbr.rel (%p159) target = $region16
        $region15: #{tpu_custom_call.1} parent=11 // pred_region
          %s163 = ssub.s32 256, 256
          %164 = vsyncadd [#allocation8], %s163
          %s165 = sshll.u32 [#allocation7], 4
          %s166 = int_to_ptr.vmem [resolvable:$true] %s165
          %171 = dma.hbm_to_vmem [thread:$0]  %s1, 256, %s166, [#allocation8], 64, 64, 4
        $region16: #{tpu_custom_call.1} parent=11 // pred_fallthru
          _
        // Predicated region
        $region17: #{tpu_custom_call.1} parent=11 // pred_check
          %p172 = pneg %p97
        $region18: #{tpu_custom_call.1} parent=11 // pred_check_branch
          %174 = sbr.rel (%p172) target = $region20
        $region19: #{tpu_custom_call.1} parent=11 // pred_region
          %s176 = ssub.s32 256, 256
          %177 = vsyncadd [#allocation8], %s176
          %s178 = sshll.u32 [#allocation9], 4
          %s179 = int_to_ptr.vmem [resolvable:$true] %s178
          %184 = dma.hbm_to_vmem [thread:$0]  %s2, 256, %s179, [#allocation8], 64, 64, 4
        $region20: #{tpu_custom_call.1} parent=11 // pred_fallthru
          _
        // Predicated region
        $region21: #{tpu_custom_call.1} parent=11 // pred_check
          %p185 = pneg %p118
        $region22: #{tpu_custom_call.1} parent=11 // pred_check_branch
          %187 = sbr.rel (%p185) target = $region24
        $region23: #{tpu_custom_call.1} parent=11 // pred_region
          _
        $region24: #{tpu_custom_call.1} parent=11 // pred_fallthru
          _
      $region12: #{tpu_custom_call.1} parent=5 // pred_fallthru
        _
      %p188 = scmp.lt.s32.totalorder %s15, 2
      // Predicated region
      $region25: #{tpu_custom_call.1} parent=5 // pred_check
        %p189 = pneg %p188
      $region26: #{tpu_custom_call.1} parent=5 // pred_check_branch
        %191 = sbr.rel (%p189) target = $region28
      $region27: #{tpu_custom_call.1} parent=5 // pred_region
        // Predicated region
        $region29: #{tpu_custom_call.1} parent=27 // pred_check
          %p192 = pneg %p49
        $region30: #{tpu_custom_call.1} parent=27 // pred_check_branch
          %194 = sbr.rel (%p192) target = $region32
        $region31: #{tpu_custom_call.1} parent=27 // pred_region
          %s195 = sand.u32 %s39, 1
          %s196 = scalar_lea.sflag [#allocation5], %s195
          %s197 = sand.u32 %s39, 1
          %s198 = smul.addr %s197, 8
          %s199 = scalar_lea.vmem [#allocation4], %s198
          %s200 = smul.u32 4, %s23
          %s202 = ssub.s32 128, 128
          %203 = vsyncadd %s196, %s202
          %s204 = sadd.s32 %s22, %s200
          %s205 = smul.addr %s204, 32
          %s206 = scalar_lea.hbm %s0, %s205
          %s207 = sshll.u32 %s199, 4
          %s208 = int_to_ptr.vmem [resolvable:$true] %s207
          %213 = dma.hbm_to_vmem [thread:$0]  %s206, 128, %s208, %s196, 32, 32, 2
        $region32: #{tpu_custom_call.1} parent=27 // pred_fallthru
          _
      $region28: #{tpu_custom_call.1} parent=5 // pred_fallthru
        _
      %p214 = scmp.le.s32.totalorder 1, %s15
      %p215 = scmp.lt.s32.totalorder %s15, 3
      %p216 = pnand %p214, %p215
      %p217 = pneg %p216
      // Predicated region
      $region33: #{tpu_custom_call.1} parent=5 // pred_check
        _
      $region34: #{tpu_custom_call.1} parent=5 // pred_check_branch
        %219 = sbr.rel (%p216) target = $region36
      $region35: #{tpu_custom_call.1} parent=5 // pred_region
        %s220 = ssub.s32 %s15, 1
        %s221 = sand.u32 %s42, 1
        %s222 = scalar_lea.sflag [#allocation5], %s221
        %s223 = sand.u32 %s42, 1
        %s224 = smul.addr %s223, 8
        %s225 = scalar_lea.vmem [#allocation4], %s224
        // Predicated region
        $region37: #{tpu_custom_call.1} parent=35 // pred_check
          %p226 = pneg %p55
        $region38: #{tpu_custom_call.1} parent=35 // pred_check_branch
          %228 = sbr.rel (%p226) target = $region40
        $region39: #{tpu_custom_call.1} parent=35 // pred_region
          %229 = dma.done %s222, 128
        $region40: #{tpu_custom_call.1} parent=35 // pred_fallthru
          _
        // Predicated region
        $region41: #{tpu_custom_call.1} parent=35 // pred_check
          %p230 = pneg %p76
        $region42: #{tpu_custom_call.1} parent=35 // pred_check_branch
          %232 = sbr.rel (%p230) target = $region44
        $region43: #{tpu_custom_call.1} parent=35 // pred_region
          %233 = dma.done [#allocation8], 256
        $region44: #{tpu_custom_call.1} parent=35 // pred_fallthru
          _
        // Predicated region
        $region45: #{tpu_custom_call.1} parent=35 // pred_check
          %p234 = pneg %p97
        $region46: #{tpu_custom_call.1} parent=35 // pred_check_branch
          %236 = sbr.rel (%p234) target = $region48
        $region47: #{tpu_custom_call.1} parent=35 // pred_region
          %237 = dma.done [#allocation8], 256
        $region48: #{tpu_custom_call.1} parent=35 // pred_fallthru
          _
        %s238 = sand.u32 %s42, 1
        %s239 = scalar_lea.sflag [#allocation5], %s238
        %s240 = sand.u32 %s42, 1
        %s241 = smul.addr %s240, 8
        %s242 = scalar_lea.vmem [#allocation4], %s241
        %p243 = pneg %p55
        %p244 = pneg %p52
        %p245 = pneg %p76
        %p246 = pneg %p73
        %p247 = pneg %p97
        %p248 = pneg %p94
        %p249 = pneg %p118
        %p250 = pneg %p115
        %p251 = pneg %p144
        %p252 = pneg %p141
        %s253 = smul.u32 4, %s25
        %p255 = scmp.eq.s32.totalorder %s25, 0
        // Predicated region
        $region49: #{tpu_custom_call.1} parent=35 // pred_check
          %p256 = pneg %p255
        $region50: #{tpu_custom_call.1} parent=35 // pred_check_branch
          %258 = sbr.rel (%p256) target = $region52
        $region51: #{tpu_custom_call.1} parent=35 // pred_region
          %vm259 = vcmask 254976
          %260 = vst.msk [vmem:[#allocation2] sm:$0x3] %vm259, 0.0
          %261 = vst.msk [vmem:[#allocation3] sm:$0x3] %vm259, 0.0
        $region52: #{tpu_custom_call.1} parent=35 // pred_fallthru
          _
        %v262 = vld [vmem:[#allocation7] sm:$0xf]
        %v263 = vld [vmem:[#allocation7 + $0x4] sm:$0xf]
        %v264 = vld [vmem:[#allocation7 + $0x8] sm:$0xf]
        %v265 = vld [vmem:[#allocation7 + $0xc] sm:$0xf]
        %v266 = vld [vmem:[#allocation2] sm:$0x3]
        %v267 = vld [vmem:[#allocation3] sm:$0x3]
        %v268 = vld [vmem:[%s225] sm:$0x3]
        %v269 = vpack.c.bf16 %v266, %v266
        %v274 = vunpack.c.l.b16 %v262
        %v275 = vunpack.c.l.b16 %v263
        %v276 = vunpack.c.l.b16 %v264
        %v277 = vunpack.c.l.b16 %v265
        %v278 = vpack.c.b16 %v275, %v274
        %v279 = vpack.c.b16 %v277, %v276
        %vm282 = vcmask 261120
        %v284 = vsel %vm282, %v269, 0
        %286 = vmatprep.subr.bf16.mxu0 0
        %287 = vmatpush1.bf16.msra.mxu0 0
        %288 = vmatprep.subr.bf16.mxu0 0
        %289 = vmatpush1.bf16.msra.mxu0 0
        %290 = vmatprep.subr.bf16.mxu0 0
        %291 = vmatpush1.bf16.msra.mxu0 0
        %292 = vmatprep.subr.bf16.mxu0 0
        %293 = vmatpush1.bf16.msra.mxu0 0
        %294 = vmatprep.subr.bf16.mxu0 0
        %295 = vmatpush1.bf16.msra.mxu0 0
        %296 = vmatprep.subr.bf16.mxu0 0
        %297 = vmatpush1.bf16.msra.mxu0 0
        %298 = vmatprep.subr.bf16.mxu0 0
        %299 = vmatpush1.bf16.msra.mxu0 %v279
        %300 = vmatprep.subr.bf16.mxu0 0
        %301 = vmatpush1.bf16.msra.mxu0 %v278
        %302 = vmatprep.subr.bf16.mxu0 0
        %303 = vmatpush2.bf16.msra.mxu0 0
        %304 = vmatprep.subr.bf16.mxu0 0
        %305 = vmatpush2.bf16.msra.mxu0 0
        %306 = vmatprep.subr.bf16.mxu0 0
        %307 = vmatpush2.bf16.msra.mxu0 0
        %308 = vmatprep.subr.bf16.mxu0 0
        %309 = vmatpush2.bf16.msra.mxu0 0
        %310 = vmatprep.subr.bf16.mxu0 0
        %311 = vmatpush2.bf16.msra.mxu0 0
        %312 = vmatprep.subr.bf16.mxu0 0
        %313 = vmatpush2.bf16.msra.mxu0 0
        %314 = vmatprep.subr.bf16.mxu0 0
        %315 = vmatpush2.bf16.msra.mxu0 0
        %316 = vmatprep.subr.bf16.mxu0 0
        %317 = vmatpush2.bf16.msra.mxu0 0
        %318 = vmatprep.mubr.bf16.mxu0 0
        %319 = vmatmul.mubr.bf16.gmra.mxu0 %v284
        %v320 = vpop.f32.mrf.mxu0
        %v321 = vadd.f32 0.0, %v320
        %v322 = vpop.f32.mrf.mxu0
        %v323 = vpop.f32.mrf.mxu0
        %v324 = vpop.f32.mrf.mxu0
        %325 = vdwg.mxu0
        %v326 = vadd.f32 %v268, %v321
        %v327 = vxor.u32 %v326, 2147483648
        %v328 = vmul.f32 %v327, 1.442695
        %v329 = vpow.pop %v328
        %v330 = vadd.f32 %v329, 1.0
        %v331 = vrcp.pop %v330
        %v332 = vmul.f32 1.0, %v331
        %v333 = vtanh.pop %v326
        %335 = vrot.lane.b32.xlu0 %v267, 32
        %v336 = vpop.permute.xlu0 %335
        %v338 = vmul.f32 %v332, %v336
        %340 = vrot.lane.b32.xlu0 %v333, 64
        %v341 = vpop.permute.xlu0 %340
        %v343 = vmul.f32 %v332, %v341
        %345 = vrot.lane.b32.xlu0 %v343, 32
        %v346 = vpop.permute.xlu0 %345
        %v348 = vadd.f32 %v338, %v346
        %v349 = vtanh.pop %v348
        %351 = vrot.lane.b32.xlu0 %v349, 64
        %v352 = vpop.permute.xlu0 %351
        %v354 = vmul.f32 %v332, %v352
        %s355 = scalar_lea.vmem %s225, 2 [#allocation4]
        %v356 = vld [vmem:[%s355] sm:$0x3]
        %v357 = vpack.c.bf16 %v354, %v354
        %359 = vrot.lane.b32.xlu0 %v357, 32
        %v360 = vpop.permute.xlu0 %359
        %v362 = vsel %vm282, %v360, 0
        %364 = vmatprep.subr.bf16.mxu0 0
        %365 = vmatpush1.bf16.msra.mxu0 0
        %366 = vmatprep.subr.bf16.mxu0 0
        %367 = vmatpush1.bf16.msra.mxu0 0
        %368 = vmatprep.subr.bf16.mxu0 0
        %369 = vmatpush1.bf16.msra.mxu0 0
        %370 = vmatprep.subr.bf16.mxu0 0
        %371 = vmatpush1.bf16.msra.mxu0 0
        %372 = vmatprep.subr.bf16.mxu0 0
        %373 = vmatpush1.bf16.msra.mxu0 0
        %374 = vmatprep.subr.bf16.mxu0 0
        %375 = vmatpush1.bf16.msra.mxu0 0
        %376 = vmatprep.subr.bf16.mxu0 0
        %377 = vmatpush1.bf16.msra.mxu0 %v279
        %378 = vmatprep.subr.bf16.mxu0 0
        %379 = vmatpush1.bf16.msra.mxu0 %v278
        %380 = vmatprep.subr.bf16.mxu0 0
        %381 = vmatpush2.bf16.msra.mxu0 0
        %382 = vmatprep.subr.bf16.mxu0 0
        %383 = vmatpush2.bf16.msra.mxu0 0
        %384 = vmatprep.subr.bf16.mxu0 0
        %385 = vmatpush2.bf16.msra.mxu0 0
        %386 = vmatprep.subr.bf16.mxu0 0
        %387 = vmatpush2.bf16.msra.mxu0 0
        %388 = vmatprep.subr.bf16.mxu0 0
        %389 = vmatpush2.bf16.msra.mxu0 0
        %390 = vmatprep.subr.bf16.mxu0 0
        %391 = vmatpush2.bf16.msra.mxu0 0
        %392 = vmatprep.subr.bf16.mxu0 0
        %393 = vmatpush2.bf16.msra.mxu0 0
        %394 = vmatprep.subr.bf16.mxu0 0
        %395 = vmatpush2.bf16.msra.mxu0 0
        %396 = vmatprep.mubr.bf16.mxu0 0
        %397 = vmatmul.mubr.bf16.gmra.mxu0 %v362
        %v398 = vpop.f32.mrf.mxu0
        %v399 = vadd.f32 0.0, %v398
        %v400 = vpop.f32.mrf.mxu0
        %v401 = vpop.f32.mrf.mxu0
        %v402 = vpop.f32.mrf.mxu0
        %403 = vdwg.mxu0
        %v404 = vadd.f32 %v356, %v399
        %v405 = vxor.u32 %v404, 2147483648
        %v406 = vmul.f32 %v405, 1.442695
        %v407 = vpow.pop %v406
        %v408 = vadd.f32 %v407, 1.0
        %v409 = vrcp.pop %v408
        %v410 = vmul.f32 1.0, %v409
        %v411 = vtanh.pop %v404
        %v412 = vmul.f32 %v410, %v348
        %414 = vrot.lane.b32.xlu0 %v411, 64
        %v415 = vpop.permute.xlu0 %414
        %v417 = vmul.f32 %v410, %v415
        %419 = vrot.lane.b32.xlu0 %v417, 32
        %v420 = vpop.permute.xlu0 %419
        %v422 = vadd.f32 %v412, %v420
        %v423 = vtanh.pop %v422
        %425 = vrot.lane.b32.xlu0 %v423, 64
        %v426 = vpop.permute.xlu0 %425
        %v428 = vmul.f32 %v410, %v426
        %s429 = scalar_lea.vmem %s225, 4 [#allocation4]
        %v430 = vld [vmem:[%s429] sm:$0x3]
        %v431 = vpack.c.bf16 %v428, %v428
        %433 = vrot.lane.b32.xlu0 %v431, 32
        %v434 = vpop.permute.xlu0 %433
        %v436 = vsel %vm282, %v434, 0
        %438 = vmatprep.subr.bf16.mxu0 0
        %439 = vmatpush1.bf16.msra.mxu0 0
        %440 = vmatprep.subr.bf16.mxu0 0
        %441 = vmatpush1.bf16.msra.mxu0 0
        %442 = vmatprep.subr.bf16.mxu0 0
        %443 = vmatpush1.bf16.msra.mxu0 0
        %444 = vmatprep.subr.bf16.mxu0 0
        %445 = vmatpush1.bf16.msra.mxu0 0
        %446 = vmatprep.subr.bf16.mxu0 0
        %447 = vmatpush1.bf16.msra.mxu0 0
        %448 = vmatprep.subr.bf16.mxu0 0
        %449 = vmatpush1.bf16.msra.mxu0 0
        %450 = vmatprep.subr.bf16.mxu0 0
        %451 = vmatpush1.bf16.msra.mxu0 %v279
        %452 = vmatprep.subr.bf16.mxu0 0
        %453 = vmatpush1.bf16.msra.mxu0 %v278
        %454 = vmatprep.subr.bf16.mxu0 0
        %455 = vmatpush2.bf16.msra.mxu0 0
        %456 = vmatprep.subr.bf16.mxu0 0
        %457 = vmatpush2.bf16.msra.mxu0 0
        %458 = vmatprep.subr.bf16.mxu0 0
        %459 = vmatpush2.bf16.msra.mxu0 0
        %460 = vmatprep.subr.bf16.mxu0 0
        %461 = vmatpush2.bf16.msra.mxu0 0
        %462 = vmatprep.subr.bf16.mxu0 0
        %463 = vmatpush2.bf16.msra.mxu0 0
        %464 = vmatprep.subr.bf16.mxu0 0
        %465 = vmatpush2.bf16.msra.mxu0 0
        %466 = vmatprep.subr.bf16.mxu0 0
        %467 = vmatpush2.bf16.msra.mxu0 0
        %468 = vmatprep.subr.bf16.mxu0 0
        %469 = vmatpush2.bf16.msra.mxu0 0
        %470 = vmatprep.mubr.bf16.mxu0 0
        %471 = vmatmul.mubr.bf16.gmra.mxu0 %v436
        %v472 = vpop.f32.mrf.mxu0
        %v473 = vadd.f32 0.0, %v472
        %v474 = vpop.f32.mrf.mxu0
        %v475 = vpop.f32.mrf.mxu0
        %v476 = vpop.f32.mrf.mxu0
        %477 = vdwg.mxu0
        %v478 = vadd.f32 %v430, %v473
        %v479 = vxor.u32 %v478, 2147483648
        %v480 = vmul.f32 %v479, 1.442695
        %v481 = vpow.pop %v480
        %v482 = vadd.f32 %v481, 1.0
        %v483 = vrcp.pop %v482
        %v484 = vmul.f32 1.0, %v483
        %v485 = vtanh.pop %v478
        %v486 = vmul.f32 %v484, %v422
        %488 = vrot.lane.b32.xlu0 %v485, 64
        %v489 = vpop.permute.xlu0 %488
        %v491 = vmul.f32 %v484, %v489
        %493 = vrot.lane.b32.xlu0 %v491, 32
        %v494 = vpop.permute.xlu0 %493
        %v496 = vadd.f32 %v486, %v494
        %v497 = vtanh.pop %v496
        %499 = vrot.lane.b32.xlu0 %v497, 64
        %v500 = vpop.permute.xlu0 %499
        %v502 = vmul.f32 %v484, %v500
        %s503 = scalar_lea.vmem %s225, 6 [#allocation4]
        %v504 = vld [vmem:[%s503] sm:$0x3]
        %v505 = vpack.c.bf16 %v502, %v502
        %507 = vrot.lane.b32.xlu0 %v505, 32
        %v508 = vpop.permute.xlu0 %507
        %v510 = vsel %vm282, %v508, 0
        %512 = vmatprep.subr.bf16.mxu0 0
        %513 = vmatpush1.bf16.msra.mxu0 0
        %514 = vmatprep.subr.bf16.mxu0 0
        %515 = vmatpush1.bf16.msra.mxu0 0
        %516 = vmatprep.subr.bf16.mxu0 0
        %517 = vmatpush1.bf16.msra.mxu0 0
        %518 = vmatprep.subr.bf16.mxu0 0
        %519 = vmatpush1.bf16.msra.mxu0 0
        %520 = vmatprep.subr.bf16.mxu0 0
        %521 = vmatpush1.bf16.msra.mxu0 0
        %522 = vmatprep.subr.bf16.mxu0 0
        %523 = vmatpush1.bf16.msra.mxu0 0
        %524 = vmatprep.subr.bf16.mxu0 0
        %525 = vmatpush1.bf16.msra.mxu0 %v279
        %526 = vmatprep.subr.bf16.mxu0 0
        %527 = vmatpush1.bf16.msra.mxu0 %v278
        %528 = vmatprep.subr.bf16.mxu0 0
        %529 = vmatpush2.bf16.msra.mxu0 0
        %530 = vmatprep.subr.bf16.mxu0 0
        %531 = vmatpush2.bf16.msra.mxu0 0
        %532 = vmatprep.subr.bf16.mxu0 0
        %533 = vmatpush2.bf16.msra.mxu0 0
        %534 = vmatprep.subr.bf16.mxu0 0
        %535 = vmatpush2.bf16.msra.mxu0 0
        %536 = vmatprep.subr.bf16.mxu0 0
        %537 = vmatpush2.bf16.msra.mxu0 0
        %538 = vmatprep.subr.bf16.mxu0 0
        %539 = vmatpush2.bf16.msra.mxu0 0
        %540 = vmatprep.subr.bf16.mxu0 0
        %541 = vmatpush2.bf16.msra.mxu0 0
        %542 = vmatprep.subr.bf16.mxu0 0
        %543 = vmatpush2.bf16.msra.mxu0 0
        %544 = vmatprep.mubr.bf16.mxu0 0
        %545 = vmatmul.mubr.bf16.gmra.mxu0 %v510
        %v546 = vpop.f32.mrf.mxu0
        %v547 = vadd.f32 0.0, %v546
        %v548 = vpop.f32.mrf.mxu0
        %v549 = vpop.f32.mrf.mxu0
        %v550 = vpop.f32.mrf.mxu0
        %551 = vdwg.mxu0
        %v552 = vadd.f32 %v504, %v547
        %v553 = vxor.u32 %v552, 2147483648
        %v554 = vmul.f32 %v553, 1.442695
        %v555 = vpow.pop %v554
        %v556 = vadd.f32 %v555, 1.0
        %v557 = vrcp.pop %v556
        %v558 = vmul.f32 1.0, %v557
        %v559 = vtanh.pop %v552
        %v560 = vmul.f32 %v558, %v496
        %562 = vrot.lane.b32.xlu0 %v559, 64
        %v563 = vpop.permute.xlu0 %562
        %v565 = vmul.f32 %v558, %v563
        %567 = vrot.lane.b32.xlu0 %v565, 32
        %v568 = vpop.permute.xlu0 %567
        %v570 = vadd.f32 %v560, %v568
        %v571 = vtanh.pop %v570
        %573 = vrot.lane.b32.xlu0 %v571, 64
        %v574 = vpop.permute.xlu0 %573
        %v576 = vmul.f32 %v558, %v574
        %578 = vrot.lane.b32.xlu0 %v576, 32
        %v579 = vpop.permute.xlu0 %578
        %vm581 = vcmask 254976
        %582 = vst.msk [vmem:[#allocation2] sm:$0x3] %vm581, %v579
        %584 = vrot.lane.b32.xlu0 %v570, 96
        %v585 = vpop.permute.xlu0 %584
        %587 = vst.msk [vmem:[#allocation3] sm:$0x3] %vm581, %v585
        %p588 = scmp.eq.s32.totalorder %s25, 1
        // Predicated region
        $region53: #{tpu_custom_call.1} parent=35 // pred_check
          %p589 = pneg %p588
        $region54: #{tpu_custom_call.1} parent=35 // pred_check_branch
          %591 = sbr.rel (%p589) target = $region56
        $region55: #{tpu_custom_call.1} parent=35 // pred_region
          %v592 = vmax.f32 %v570, 0.0
          %v593 = vpack.c.bf16 %v592, %v592
          %v594 = vld [vmem:[#allocation9] sm:$0xf]
          %v595 = vld [vmem:[#allocation9 + $0x4] sm:$0xf]
          %v596 = vld [vmem:[#allocation9 + $0x8] sm:$0xf]
          %v597 = vld [vmem:[#allocation9 + $0xc] sm:$0xf]
          %v598 = vld [vmem:[%s3] sm:$0x1]
          %v600 = vlaneseq
          %v601 = vshrl.u32 %v600, 7
          %v602 = vsub.s32 0, %v601
          %v603 = vrot.slane %v598, %v602
          %606 = vrot.lane.b32.xlu0 %v593, 96
          %v607 = vpop.permute.xlu0 %606
          %v612 = vunpack.c.l.b16 %v594
          %v613 = vunpack.c.l.b16 %v595
          %v614 = vunpack.c.l.b16 %v596
          %v615 = vunpack.c.l.b16 %v597
          %v616 = vpack.c.b16 %v613, %v612
          %v617 = vpack.c.b16 %v615, %v614
          %v621 = vsel %vm282, %v607, 0
          %623 = vmatprep.subr.bf16.mxu0 0
          %624 = vmatpush1.bf16.msra.mxu0 0
          %625 = vmatprep.subr.bf16.mxu0 0
          %626 = vmatpush1.bf16.msra.mxu0 0
          %627 = vmatprep.subr.bf16.mxu0 0
          %628 = vmatpush1.bf16.msra.mxu0 0
          %629 = vmatprep.subr.bf16.mxu0 0
          %630 = vmatpush1.bf16.msra.mxu0 0
          %631 = vmatprep.subr.bf16.mxu0 0
          %632 = vmatpush1.bf16.msra.mxu0 0
          %633 = vmatprep.subr.bf16.mxu0 0
          %634 = vmatpush1.bf16.msra.mxu0 0
          %635 = vmatprep.subr.bf16.mxu0 0
          %636 = vmatpush1.bf16.msra.mxu0 %v617
          %637 = vmatprep.subr.bf16.mxu0 0
          %638 = vmatpush1.bf16.msra.mxu0 %v616
          %639 = vmatprep.subr.bf16.mxu0 0
          %640 = vmatpush2.bf16.msra.mxu0 0
          %641 = vmatprep.subr.bf16.mxu0 0
          %642 = vmatpush2.bf16.msra.mxu0 0
          %643 = vmatprep.subr.bf16.mxu0 0
          %644 = vmatpush2.bf16.msra.mxu0 0
          %645 = vmatprep.subr.bf16.mxu0 0
          %646 = vmatpush2.bf16.msra.mxu0 0
          %647 = vmatprep.subr.bf16.mxu0 0
          %648 = vmatpush2.bf16.msra.mxu0 0
          %649 = vmatprep.subr.bf16.mxu0 0
          %650 = vmatpush2.bf16.msra.mxu0 0
          %651 = vmatprep.subr.bf16.mxu0 0
          %652 = vmatpush2.bf16.msra.mxu0 0
          %653 = vmatprep.subr.bf16.mxu0 0
          %654 = vmatpush2.bf16.msra.mxu0 0
          %655 = vmatprep.mubr.bf16.mxu0 0
          %656 = vmatmul.mubr.bf16.gmra.mxu0 %v621
          %v657 = vpop.f32.mrf.mxu0
          %v658 = vadd.f32 %v603, %v657
          %v659 = vpop.f32.mrf.mxu0
          %v660 = vpop.f32.mrf.mxu0
          %v661 = vpop.f32.mrf.mxu0
          %662 = vdwg.mxu0
          %663 = vst [vmem:[#allocation10] sm:$0x3] %v658
        $region56: #{tpu_custom_call.1} parent=35 // pred_fallthru
          _
        // Predicated region
        $region57: #{tpu_custom_call.1} parent=35 // pred_check
          %p664 = pneg %p141
        $region58: #{tpu_custom_call.1} parent=35 // pred_check_branch
          %666 = sbr.rel (%p664) target = $region60
        $region59: #{tpu_custom_call.1} parent=35 // pred_region
          %s668 = ssub.s32 32, 32
          %669 = vsyncadd [#allocation6], %s668
          %s670 = smul.addr %s24, 32
          %s671 = scalar_lea.hbm %s4, %s670
          %s673 = sshll.u32 [#allocation10], 4
          %s674 = int_to_ptr.vmem [resolvable:$true] %s673
          %676 = dma.vmem_to_hbm [thread:$0]  %s674, 32, %s671, [#allocation6]
        $region60: #{tpu_custom_call.1} parent=35 // pred_fallthru
          _
        // Predicated region
        $region61: #{tpu_custom_call.1} parent=35 // pred_check
          %p677 = pneg %p141
        $region62: #{tpu_custom_call.1} parent=35 // pred_check_branch
          %679 = sbr.rel (%p677) target = $region64
        $region63: #{tpu_custom_call.1} parent=35 // pred_region
          %680 = dma.done [#allocation6], 32
        $region64: #{tpu_custom_call.1} parent=35 // pred_fallthru
          _
      $region36: #{tpu_custom_call.1} parent=5 // pred_fallthru
        _
      %p681 = scmp.le.s32.totalorder 2, %s15
      // Predicated region
      $region65: #{tpu_custom_call.1} parent=5 // pred_check
        %p682 = pneg %p681
      $region66: #{tpu_custom_call.1} parent=5 // pred_check_branch
        %684 = sbr.rel (%p682) target = $region68
      $region67: #{tpu_custom_call.1} parent=5 // pred_region
        %s685 = ssub.s32 %s15, 2
      $region68: #{tpu_custom_call.1} parent=5 // pred_fallthru
        _
    $region6: #{tpu_custom_call.1} parent=1 // loop_footer
      %s19 = sadd.s32 1, %s15
    $region7: #{tpu_custom_call.1} parent=1 // loop_footer_branch
      %14 = sbr.rel target = $region3
    $region8: #{tpu_custom_call.1} parent=1 // loop_exit
      _
    %686 = vsyncpa [#allocation5], 1
    %s687 = scalar_lea.sflag [#allocation5], 1
    %688 = vsyncpa %s687, 1
    %689 = vsyncpa [#allocation8], 1
    %690 = vsyncpa [#allocation6], 1
    %s691 = scalar_lea.sflag [#allocation6], 1
    %692 = vsyncpa %s691, 1

</llo_original>
